<compile_context>
chip_gen: v6e
topology: v6e:2x2x1
jax: 0.10.0
libtpu: 0.0.40
codegen_flags: <defaults>
</compile_context>

<pallas_src>
import functools

import jax
import jax.numpy as jnp
from jax import lax
from jax.experimental import pallas as pl
from jax.experimental.pallas import tpu as pltpu


def _fcn_kernel(x_ref, w_ref, b_ref, o_ref, *, approx_gelu):
    # x_ref: (tm, K) bf16   w_ref: (K, tn) bf16   b_ref: (1, tn) f32
    # o_ref: (tm, tn)
    y = jnp.dot(x_ref[...], w_ref[...], preferred_element_type=jnp.float32)
    y = y + b_ref[...]                      # bias already f32
    if approx_gelu:
        # tanh-approx GELU -> EUP slot (nearly free once the MXU is bf16-fast).
        c = jnp.float32(0.7978845608028654)
        g = jnp.float32(0.5) * y * (jnp.float32(1.0)
                                    + jnp.tanh(c * (y + jnp.float32(0.044715) * y * y * y)))
    else:
        # exact gelu:  x * 0.5 * (1 + erf(x / sqrt(2)))  (matches torch reference)
        inv_sqrt2 = jnp.float32(0.7071067811865476)
        g = y * jnp.float32(0.5) * (jnp.float32(1.0) + lax.erf(y * inv_sqrt2))
    o_ref[...] = g.astype(o_ref.dtype)


def fcn_forward(x, weight, bias, *, tm=1024, tn=512, out_dtype=None,
                approx_gelu=False):
    """x: (B, S, H). weight: (intermediate, hidden) PyTorch layout. bias: (intermediate,).
    Returns gelu(x @ weight.T + bias) of shape (B, S, intermediate)."""
    B, S, H = x.shape
    N, K = weight.shape
    assert K == H, (K, H)
    M = B * S
    out_dtype = out_dtype if out_dtype is not None else x.dtype
    out_bytes = jnp.dtype(out_dtype).itemsize

    # One-time layout conversion + bf16 cast of the MXU operands (amortized over
    # every call in real use; f32 accumulation keeps the loss at input rounding).
    x2d = x.reshape(M, H).astype(jnp.bfloat16)
    w_t = weight.T.astype(jnp.bfloat16)           # (K, N): native m,k x k,n
    b2d = bias.reshape(1, N).astype(jnp.float32)

    tm = min(tm, M)
    tn = min(tn, N)

    # Keep >= 2 grid blocks when possible so both v7x TensorCores get work.
    if pl.cdiv(M, tm) == 1 and pl.cdiv(N, tn) == 1:
        if N >= 256:
            tn = ((pl.cdiv(N, 2) + 127) // 128) * 128     # split N, lane-aligned
        elif M >= 16:
            tm = ((pl.cdiv(M, 2) + 7) // 8) * 8           # else split M

    # VMEM budget (double-buffered pipeline stages), conservative for v7x 64 MiB.
    def _vmem_need(tm_, tn_):
        xb = tm_ * K * 2          # bf16 x tile
        wb = K * tn_ * 2          # bf16 W tile
        ob = tm_ * tn_ * out_bytes
        bb = tn_ * 4
        return 2 * (xb + wb + ob + bb)

    budget = 48 * 1024 * 1024
    while _vmem_need(tm, tn) > budget and tm > 64:
        tm = max(64, tm // 2)
    vmem_limit = int(min(max(2 * _vmem_need(tm, tn) + (8 << 20), 32 << 20), 60 << 20))

    grid_m, grid_n = pl.cdiv(M, tm), pl.cdiv(N, tn)
    grid = (grid_m, grid_n)   # N innermost -> x tile block index constant, re-DMA skipped

    # Honest HBM estimate: x once, W re-streamed per M-tile, output + bias.
    cost = pl.CostEstimate(
        flops=2 * M * N * K,
        transcendentals=M * N,
        bytes_accessed=(M * K * 2) + (grid_m * N * K * 2) + (M * N * out_bytes) + (N * 4),
    )

    kernel = functools.partial(_fcn_kernel, approx_gelu=approx_gelu)

    out2d = pl.pallas_call(
        kernel,
        out_shape=jax.ShapeDtypeStruct((M, N), out_dtype),
        grid_spec=pltpu.PrefetchScalarGridSpec(
            num_scalar_prefetch=0,
            grid=grid,
            in_specs=[
                pl.BlockSpec((tm, H), lambda i, j: (i, 0)),   # x: stationary over j
                pl.BlockSpec((H, tn), lambda i, j: (0, j)),   # W (K,N): streams over j
                pl.BlockSpec((1, tn), lambda i, j: (0, j)),   # bias slice per N-tile
            ],
            out_specs=pl.BlockSpec((tm, tn), lambda i, j: (i, j)),
        ),
        compiler_params=pltpu.CompilerParams(
            dimension_semantics=("parallel", "parallel"),
            vmem_limit_bytes=vmem_limit),
        cost_estimate=cost,
    )(x2d, w_t, b2d)

    return out2d.reshape(B, S, N)


def _reference(x, weight, bias):
    y = jnp.einsum("bsh,nh->bsn", x.astype(jnp.float32),
                   weight.astype(jnp.float32)) + bias.astype(jnp.float32)
    return y * 0.5 * (1.0 + lax.erf(y / jnp.sqrt(2.0)))


if __name__ == "__main__":
    # Small, lane-aligned BertConfig-style sizes (hidden -> intermediate).
    batch, seq = 2, 8
    hidden_size = 128
    intermediate_size = 256

    key = jax.random.PRNGKey(0)
    kx, kw, kb = jax.random.split(key, 3)

    x = jax.random.normal(kx, (batch, seq, hidden_size), dtype=jnp.float32)
    # PyTorch Linear params: weight (out, in), bias (out,).
    weight = jax.random.normal(
        kw, (intermediate_size, hidden_size), dtype=jnp.float32) * 0.05
    bias = jax.random.normal(kb, (intermediate_size,), dtype=jnp.float32) * 0.05

    out = fcn_forward(x, weight, bias)
    out = jax.block_until_ready(out)

    ref = _reference(x, weight, bias)
    assert out.shape == (batch, seq, intermediate_size)
    # bf16 MXU operands (f32 accumulation) -> input-rounding-level differences.
    max_err = float(jnp.max(jnp.abs(out.astype(jnp.float32) - ref)))
    assert jnp.allclose(out.astype(jnp.float32), ref, atol=2e-2, rtol=2e-2), max_err

    print("KERNEL_OK")
</pallas_src>

<mosaic_0001>
module attributes {stable_mosaic.version = 11 : i64} {
  func.func @_fcn_kernel(%arg0: i32, %arg1: i32, %arg2: memref<16x128xbf16, #tpu.memory_space<vmem>>, %arg3: memref<128x128xbf16, #tpu.memory_space<vmem>>, %arg4: memref<1x128xf32, #tpu.memory_space<vmem>>, %arg5: memref<16x128xf32, #tpu.memory_space<vmem>>) attributes {dimension_semantics = [#tpu.dimension_semantics<parallel>, #tpu.dimension_semantics<parallel>], iteration_bounds = array<i64: 1, 2>, scalar_prefetch = 0 : i64, scratch_operands = 0 : i64, tpu.core_type = #tpu.core_type<tc>, window_params = [{transform_indices = @transform_0, window_bounds = array<i64: 16, 128>}, {transform_indices = @transform_1, window_bounds = array<i64: 128, 128>}, {transform_indices = @transform_2, window_bounds = array<i64: 1, 128>}, {transform_indices = @transform_3, window_bounds = array<i64: 16, 128>}]} {
    %c0 = arith.constant 0 : index
    %c0_0 = arith.constant 0 : index
    %0 = vector.load %arg2[%c0, %c0_0] : memref<16x128xbf16, #tpu.memory_space<vmem>>, vector<16x128xbf16>
    %c0_1 = arith.constant 0 : index
    %c0_2 = arith.constant 0 : index
    %1 = vector.load %arg3[%c0_1, %c0_2] : memref<128x128xbf16, #tpu.memory_space<vmem>>, vector<128x128xbf16>
    %cst = arith.constant dense<0.000000e+00> : vector<16x128xf32>
    %2 = tpu.matmul %0, %1, %cst {dimension_numbers = #tpu.dot_dimension_numbers<[1], [0], [0], [1], [0, 0, 1, 1], [], []>} : vector<16x128xbf16>, vector<128x128xbf16>, vector<16x128xf32> -> vector<16x128xf32>
    %c0_3 = arith.constant 0 : index
    %c0_4 = arith.constant 0 : index
    %3 = vector.load %arg4[%c0_3, %c0_4] : memref<1x128xf32, #tpu.memory_space<vmem>>, vector<1x128xf32>
    %4 = vector.broadcast %3 : vector<1x128xf32> to vector<16x128xf32>
    %5 = arith.addf %2, %4 : vector<16x128xf32>
    %cst_5 = arith.constant 5.000000e-01 : f32
    %6 = vector.broadcast %cst_5 : f32 to vector<16x128xf32>
    %7 = arith.mulf %5, %6 : vector<16x128xf32>
    %cst_6 = arith.constant 0.707106769 : f32
    %8 = vector.broadcast %cst_6 : f32 to vector<16x128xf32>
    %9 = arith.mulf %5, %8 : vector<16x128xf32>
    %10 = math.erf %9 : vector<16x128xf32>
    %cst_7 = arith.constant 1.000000e+00 : f32
    %11 = vector.broadcast %cst_7 : f32 to vector<16x128xf32>
    %12 = arith.addf %11, %10 : vector<16x128xf32>
    %13 = arith.mulf %7, %12 : vector<16x128xf32>
    %c0_8 = arith.constant 0 : index
    %c0_9 = arith.constant 0 : index
    %14 = vector.load %arg5[%c0_8, %c0_9] : memref<16x128xf32, #tpu.memory_space<vmem>>, vector<16x128xf32>
    tpu.vector_store %arg5[%c0_8, %c0_9], %13 {strides = array<i32>} : memref<16x128xf32, #tpu.memory_space<vmem>>, vector<16x128xf32>,
    return
  }
  func.func @transform_0(%arg0: i32, %arg1: i32) -> (i32, i32) {
    %c0_i32 = arith.constant 0 : i32
    %c0_i32_0 = arith.constant 0 : i32
    return %arg0, %c0_i32 : i32, i32
  }
  func.func @transform_1(%arg0: i32, %arg1: i32) -> (i32, i32) {
    %c0_i32 = arith.constant 0 : i32
    %c0_i32_0 = arith.constant 0 : i32
    return %c0_i32, %arg1 : i32, i32
  }
  func.func @transform_2(%arg0: i32, %arg1: i32) -> (i32, i32) {
    %c0_i32 = arith.constant 0 : i32
    %c0_i32_0 = arith.constant 0 : i32
    return %c0_i32, %arg1 : i32, i32
  }
  func.func @transform_3(%arg0: i32, %arg1: i32) -> (i32, i32) {
    %c0_i32 = arith.constant 0 : i32
    return %arg0, %arg1 : i32, i32
  }
}

</mosaic_0001>

<llo_original>
// kernel: tpu_custom_call.1
$region0: #{tpu_custom_call.1}
  #allocation0 [shape = 'u32[]', space=smem, size = 0x4, offset = 0x4, fixed_abs, tag = 'smem constant byte address 0x4 - core index']
  #allocation1 [shape = 'u32[144,128]{1,0:T(1,128)}', space=vmem, size = 0x12000, scoped, tag = 'internal scratch']
  %s0 = inlined_call_operand.hbm [shape: bf16[16,128], index: 0, kind: input, shape index: {}]
  %s1 = inlined_call_operand.hbm [shape: bf16[128,256], index: 1, kind: input, shape index: {}]
  %s2 = inlined_call_operand.vmem [shape: f32[1,256], index: 2, kind: input, shape index: {}]
  %s3 = inlined_call_operand.hbm [shape: f32[16,256], index: 3, kind: output, shape index: {}]
  %s4 = sld [smem:[#allocation0]]
  $region53: #{tpu_custom_call.1} parent=0
    _
  %s6 = ssub.s32 1, %s4
  %s7 = scalar_select 0, %s6, %s4
  $region1: #{tpu_custom_call.1} parent=0
    #allocation2 [shape = 'u8[4096]{0}', space=vmem, size = 0x1000, scoped, tag = 'input window, operand 0, single buffered']
    #allocation3 [shape = 's32[2]{0}', space=sflag, size = 0x8, scoped, tag = 'scoped memory for tpu_custom_call.1']
    #allocation4 [shape = 's32[2]{0}', space=sflag, size = 0x8, scoped, tag = 'scoped memory for tpu_custom_call.1']
    #allocation5 [shape = 'u8[65536]{0}', space=vmem, size = 0x10000, scoped, tag = 'input window, operand 1']
    #allocation6 [shape = 's32[2]{0}', space=sflag, size = 0x8, scoped, tag = 'scoped memory for tpu_custom_call.1']
    #allocation7 [shape = 'u8[16384]{0}', space=vmem, size = 0x4000, scoped, tag = 'output window, operand 0']
    %8 = vsyncpa [#allocation3], 0
    %9 = vsyncpa [#allocation6], 0
    %s10 = scalar_lea.sflag [#allocation6], 1
    %11 = vsyncpa %s10, 0
    %12 = vsyncpa [#allocation4], 0
    %s13 = scalar_lea.sflag [#allocation4], 1
    %14 = vsyncpa %s13, 0
    loop: start=0, step=1, limit=4
    $region2: #{tpu_custom_call.1} parent=1 // loop_pre_header
      _
    $region3: #{tpu_custom_call.1} parent=1 // loop_header
      %s16 = sphi 0, %s20
      %p17 = scmp.ge.s32.totalorder %s16, 4
      %s23 = sphi 0, %s35
      %s24 = sphi 0, %s31
      %s25 = sphi 0, %s23
      %s26 = sphi 0, %s24
      %s27 = sphi 0, %s25
      %s28 = sphi 0, %s26
      %s38 = sphi 0, %s40
      %s41 = sphi 0, %s38
      %s42 = sphi 0, %s41
      %s58 = sphi 0, %s42
      %s64 = sphi 0, %s66
      %s67 = sphi 0, %s64
      %s68 = sphi 0, %s67
      %s84 = sphi 0, %s68
      %s90 = sphi 0, %s92
      %s93 = sphi 0, %s90
      %s94 = sphi 0, %s93
      %s110 = sphi 0, %s94
      %s118 = sphi 0, %s120
      %s121 = sphi 0, %s118
      %s122 = sphi 0, %s121
      %s138 = sphi 0, %s122
    $region4: #{tpu_custom_call.1} parent=1 // loop_header_branch
      %19 = sbr.rel (%p17) target = $region8
    $region5: #{tpu_custom_call.1} parent=1 // loop_body
      %s21 = ssub.s32 %s16, 1
      %s22 = ssub.s32 %s16, 2
      %s29 = sadd.s32 1, %s24
      %p30 = scmp.ge.s32.totalorder %s29, 2
      %s31 = scalar_select %p30, 0, %s29
      %s32 = sadd.s32 1, %s23
      %s33 = scalar_select %p30, %s32, %s23
      %p34 = scmp.ge.s32.totalorder %s33, 1
      %s35 = scalar_select %p34, 0, %s33
      %s36 = ssub.s32 %s23, %s35
      %p37 = scmp.eq.s32.totalorder %s36, 0
      %s39 = sadd.s32 %s38, 1
      %s40 = scalar_select %p37, %s38, %s39
      %p43 = pneg %p37
      %p44 = scmp.eq.s32.totalorder %s16, 1
      %p45 = por %p43, %p44
      %p46 = scmp.ne.s32.totalorder %s38, %s41
      %p47 = scmp.eq.s32.totalorder %s16, 0
      %p48 = por %p46, %p47
      %p49 = scmp.ne.s32.totalorder %s38, %s41
      %p50 = scmp.eq.s32.totalorder %s21, 1
      %p51 = por %p49, %p50
      %p52 = scmp.ne.s32.totalorder %s41, %s42
      %p53 = scmp.eq.s32.totalorder %s21, 0
      %p54 = por %p52, %p53
      %p55 = scmp.ne.s32.totalorder %s41, %s42
      %p56 = scmp.eq.s32.totalorder %s22, 1
      %p57 = por %p55, %p56
      %p59 = scmp.ne.s32.totalorder %s42, %s58
      %p60 = scmp.eq.s32.totalorder %s22, 0
      %p61 = por %p59, %p60
      %s62 = ssub.s32 %s24, %s31
      %p63 = scmp.eq.s32.totalorder %s62, 0
      %s65 = sadd.s32 %s64, 1
      %s66 = scalar_select %p63, %s64, %s65
      %p69 = pneg %p63
      %p70 = scmp.eq.s32.totalorder %s16, 1
      %p71 = por %p69, %p70
      %p72 = scmp.ne.s32.totalorder %s64, %s67
      %p73 = scmp.eq.s32.totalorder %s16, 0
      %p74 = por %p72, %p73
      %p75 = scmp.ne.s32.totalorder %s64, %s67
      %p76 = scmp.eq.s32.totalorder %s21, 1
      %p77 = por %p75, %p76
      %p78 = scmp.ne.s32.totalorder %s67, %s68
      %p79 = scmp.eq.s32.totalorder %s21, 0
      %p80 = por %p78, %p79
      %p81 = scmp.ne.s32.totalorder %s67, %s68
      %p82 = scmp.eq.s32.totalorder %s22, 1
      %p83 = por %p81, %p82
      %p85 = scmp.ne.s32.totalorder %s68, %s84
      %p86 = scmp.eq.s32.totalorder %s22, 0
      %p87 = por %p85, %p86
      %s88 = ssub.s32 %s24, %s31
      %p89 = scmp.eq.s32.totalorder %s88, 0
      %s91 = sadd.s32 %s90, 1
      %s92 = scalar_select %p89, %s90, %s91
      %p95 = pneg %p89
      %p96 = scmp.eq.s32.totalorder %s16, 1
      %p97 = por %p95, %p96
      %p98 = scmp.ne.s32.totalorder %s90, %s93
      %p99 = scmp.eq.s32.totalorder %s16, 0
      %p100 = por %p98, %p99
      %p101 = scmp.ne.s32.totalorder %s90, %s93
      %p102 = scmp.eq.s32.totalorder %s21, 1
      %p103 = por %p101, %p102
      %p104 = scmp.ne.s32.totalorder %s93, %s94
      %p105 = scmp.eq.s32.totalorder %s21, 0
      %p106 = por %p104, %p105
      %p107 = scmp.ne.s32.totalorder %s93, %s94
      %p108 = scmp.eq.s32.totalorder %s22, 1
      %p109 = por %p107, %p108
      %p111 = scmp.ne.s32.totalorder %s94, %s110
      %p112 = scmp.eq.s32.totalorder %s22, 0
      %p113 = por %p111, %p112
      %s114 = ssub.s32 %s23, %s35
      %s115 = ssub.s32 %s24, %s31
      %s116 = sor.u32 %s114, %s115
      %p117 = scmp.eq.s32.totalorder %s116, 0
      %s119 = sadd.s32 %s118, 1
      %s120 = scalar_select %p117, %s118, %s119
      %p123 = pneg %p117
      %p124 = scmp.eq.s32.totalorder %s16, 1
      %p125 = por %p123, %p124
      %p126 = scmp.ne.s32.totalorder %s118, %s121
      %p127 = scmp.eq.s32.totalorder %s16, 0
      %p128 = por %p126, %p127
      %p129 = scmp.ne.s32.totalorder %s118, %s121
      %p130 = scmp.eq.s32.totalorder %s21, 1
      %p131 = por %p129, %p130
      %p132 = scmp.ne.s32.totalorder %s121, %s122
      %p133 = scmp.eq.s32.totalorder %s21, 0
      %p134 = por %p132, %p133
      %p135 = scmp.ne.s32.totalorder %s121, %s122
      %p136 = scmp.eq.s32.totalorder %s22, 1
      %p137 = por %p135, %p136
      %p139 = scmp.ne.s32.totalorder %s122, %s138
      %p140 = scmp.eq.s32.totalorder %s22, 0
      %p141 = por %p139, %p140
      %p142 = scmp.le.s32.totalorder 1, %s16
      %p143 = scmp.lt.s32.totalorder %s16, 3
      %p144 = pnand %p142, %p143
      %p145 = pneg %p144
      // Predicated region
      $region9: #{tpu_custom_call.1} parent=5 // pred_check
        _
      $region10: #{tpu_custom_call.1} parent=5 // pred_check_branch
        %147 = sbr.rel (%p144) target = $region12
      $region11: #{tpu_custom_call.1} parent=5 // pred_region
        %s148 = ssub.s32 %s16, 1
        // Predicated region
        $region13: #{tpu_custom_call.1} parent=11 // pred_check
          %p149 = pneg %p54
        $region14: #{tpu_custom_call.1} parent=11 // pred_check_branch
          %151 = sbr.rel (%p149) target = $region16
        $region15: #{tpu_custom_call.1} parent=11 // pred_region
          %s152 = smul.u32 2, %s25
          %s154 = ssub.s32 128, 128
          %155 = vsyncadd [#allocation3], %s154
          %s156 = smul.addr %s152, 64
          %s157 = scalar_lea.hbm %s0, %s156
          %s158 = sshll.u32 [#allocation2], 4
          %s159 = int_to_ptr.vmem [resolvable:$true] %s158
          %164 = dma.hbm_to_vmem [thread:$0]  %s157, 128, %s159, [#allocation3], 64, 64, 4
        $region16: #{tpu_custom_call.1} parent=11 // pred_fallthru
          _
      $region12: #{tpu_custom_call.1} parent=5 // pred_fallthru
        _
      %p165 = scmp.lt.s32.totalorder %s16, 2
      // Predicated region
      $region17: #{tpu_custom_call.1} parent=5 // pred_check
        %p166 = pneg %p165
      $region18: #{tpu_custom_call.1} parent=5 // pred_check_branch
        %168 = sbr.rel (%p166) target = $region20
      $region19: #{tpu_custom_call.1} parent=5 // pred_region
        // Predicated region
        $region21: #{tpu_custom_call.1} parent=19 // pred_check
          %p169 = pneg %p74
        $region22: #{tpu_custom_call.1} parent=19 // pred_check_branch
          %171 = sbr.rel (%p169) target = $region24
        $region23: #{tpu_custom_call.1} parent=19 // pred_region
          %s172 = sand.u32 %s64, 1
          %s173 = scalar_lea.sflag [#allocation6], %s172
          %s174 = sand.u32 %s64, 1
          %s175 = smul.addr %s174, 64
          %s176 = scalar_lea.vmem [#allocation5], %s175
          %s178 = ssub.s32 1024, 1024
          %179 = vsyncadd %s173, %s178
          %s180 = smul.addr %s24, 64
          %s181 = scalar_lea.hbm %s1, %s180
          %s182 = sshll.u32 %s176, 4
          %s183 = int_to_ptr.vmem [resolvable:$true] %s182
          %188 = dma.hbm_to_vmem [thread:$0]  %s181, 1024, %s183, %s173, 128, 64, 4
        $region24: #{tpu_custom_call.1} parent=19 // pred_fallthru
          _
        // Predicated region
        $region25: #{tpu_custom_call.1} parent=19 // pred_check
          %p189 = pneg %p100
        $region26: #{tpu_custom_call.1} parent=19 // pred_check_branch
          %191 = sbr.rel (%p189) target = $region28
        $region27: #{tpu_custom_call.1} parent=19 // pred_region
          %p192 = scmp.lt.s32.totalorder %s24, 1
          %s193 = scalar_select %p192, %s24, 1
          %s194 = scalar_lea.vmem %s2, %s193
        $region28: #{tpu_custom_call.1} parent=19 // pred_fallthru
          _
      $region20: #{tpu_custom_call.1} parent=5 // pred_fallthru
        _
      %p195 = scmp.le.s32.totalorder 1, %s16
      %p196 = scmp.lt.s32.totalorder %s16, 3
      %p197 = pnand %p195, %p196
      %p198 = pneg %p197
      // Predicated region
      $region29: #{tpu_custom_call.1} parent=5 // pred_check
        _
      $region30: #{tpu_custom_call.1} parent=5 // pred_check_branch
        %200 = sbr.rel (%p197) target = $region32
      $region31: #{tpu_custom_call.1} parent=5 // pred_region
        %s201 = ssub.s32 %s16, 1
        // Predicated region
        $region33: #{tpu_custom_call.1} parent=31 // pred_check
          %p202 = pneg %p54
        $region34: #{tpu_custom_call.1} parent=31 // pred_check_branch
          %204 = sbr.rel (%p202) target = $region36
        $region35: #{tpu_custom_call.1} parent=31 // pred_region
          %205 = dma.done [#allocation3], 128
        $region36: #{tpu_custom_call.1} parent=31 // pred_fallthru
          _
        %s206 = sand.u32 %s67, 1
        %s207 = scalar_lea.sflag [#allocation6], %s206
        %s208 = sand.u32 %s67, 1
        %s209 = smul.addr %s208, 64
        %s210 = scalar_lea.vmem [#allocation5], %s209
        // Predicated region
        $region37: #{tpu_custom_call.1} parent=31 // pred_check
          %p211 = pneg %p80
        $region38: #{tpu_custom_call.1} parent=31 // pred_check_branch
          %213 = sbr.rel (%p211) target = $region40
        $region39: #{tpu_custom_call.1} parent=31 // pred_region
          %214 = dma.done %s207, 1024
        $region40: #{tpu_custom_call.1} parent=31 // pred_fallthru
          _
        %p215 = pneg %p54
        %p216 = pneg %p51
        %s217 = sand.u32 %s67, 1
        %s218 = scalar_lea.sflag [#allocation6], %s217
        %s219 = sand.u32 %s67, 1
        %s220 = smul.addr %s219, 64
        %s221 = scalar_lea.vmem [#allocation5], %s220
        %p222 = pneg %p80
        %p223 = pneg %p77
        %p224 = scmp.lt.s32.totalorder %s26, 1
        %s225 = scalar_select %p224, %s26, 1
        %s226 = scalar_lea.vmem %s2, %s225
        %p227 = pneg %p106
        %p228 = pneg %p103
        %p229 = pneg %p134
        %p230 = pneg %p131
        %s231 = sand.u32 %s121, 1
        %s232 = scalar_lea.sflag [#allocation4], %s231
        %s233 = sand.u32 %s121, 1
        %s234 = smul.addr %s233, 16
        %s235 = scalar_lea.vmem [#allocation7], %s234
        %s236 = smul.u32 2, %s25
        %p237 = scmp.lt.s32.totalorder %s26, 1
        %s238 = scalar_select %p237, %s26, 1
        %s239 = scalar_lea.vmem %s2, %s238
        %s240 = smul.u32 2, %s25
        %v242 = vld [vmem:[#allocation2] sm:$0xf]
        %v243 = vld [vmem:[#allocation2 + $0x4] sm:$0xf]
        %v244 = vld [vmem:[%s210] sm:$0xf]
        %v245 = vld [vmem:[%s210 + $0x4] sm:$0xf]
        %v246 = vld [vmem:[%s210 + $0x8] sm:$0xf]
        %v247 = vld [vmem:[%s210 + $0xc] sm:$0xf]
        %v248 = vld [vmem:[%s210 + $0x10] sm:$0xf]
        %v249 = vld [vmem:[%s210 + $0x14] sm:$0xf]
        %v250 = vld [vmem:[%s210 + $0x18] sm:$0xf]
        %v251 = vld [vmem:[%s210 + $0x1c] sm:$0xf]
        %v252 = vld [vmem:[%s210 + $0x20] sm:$0xf]
        %v253 = vld [vmem:[%s210 + $0x24] sm:$0xf]
        %v254 = vld [vmem:[%s210 + $0x28] sm:$0xf]
        %v255 = vld [vmem:[%s210 + $0x2c] sm:$0xf]
        %v256 = vld [vmem:[%s210 + $0x30] sm:$0xf]
        %v257 = vld [vmem:[%s210 + $0x34] sm:$0xf]
        %v258 = vld [vmem:[%s210 + $0x38] sm:$0xf]
        %v259 = vld [vmem:[%s210 + $0x3c] sm:$0xf]
        %v260 = vld [vmem:[%s239] sm:$0x1]
        %v262 = vlaneseq
        %v263 = vshrl.u32 %v262, 7
        %v264 = vsub.s32 0, %v263
        %v265 = vrot.slane %v260, %v264
        %v269 = vunpack.c.l.b16 %v242
        %v270 = vunpack.c.l.b16 %v243
        %v271 = vpack.c.b16 %v270, %v269
        %v289 = vunpack.c.l.b16 %v244
        %v290 = vunpack.c.l.b16 %v245
        %v291 = vunpack.c.l.b16 %v246
        %v292 = vunpack.c.l.b16 %v247
        %v293 = vunpack.c.l.b16 %v248
        %v294 = vunpack.c.l.b16 %v249
        %v295 = vunpack.c.l.b16 %v250
        %v296 = vunpack.c.l.b16 %v251
        %v297 = vunpack.c.l.b16 %v252
        %v298 = vunpack.c.l.b16 %v253
        %v299 = vunpack.c.l.b16 %v254
        %v300 = vunpack.c.l.b16 %v255
        %v301 = vunpack.c.l.b16 %v256
        %v302 = vunpack.c.l.b16 %v257
        %v303 = vunpack.c.l.b16 %v258
        %v304 = vunpack.c.l.b16 %v259
        %v305 = vpack.c.b16 %v290, %v289
        %v306 = vpack.c.b16 %v292, %v291
        %v307 = vpack.c.b16 %v294, %v293
        %v308 = vpack.c.b16 %v296, %v295
        %v309 = vpack.c.b16 %v298, %v297
        %v310 = vpack.c.b16 %v300, %v299
        %v311 = vpack.c.b16 %v302, %v301
        %v312 = vpack.c.b16 %v304, %v303
        %321 = vmatprep.subr.bf16.mxu0 0
        %322 = vmatpush1.bf16.msra.mxu0 %v312
        %323 = vmatprep.subr.bf16.mxu0 0
        %324 = vmatpush1.bf16.msra.mxu0 %v311
        %325 = vmatprep.subr.bf16.mxu0 0
        %326 = vmatpush1.bf16.msra.mxu0 %v310
        %327 = vmatprep.subr.bf16.mxu0 0
        %328 = vmatpush1.bf16.msra.mxu0 %v309
        %329 = vmatprep.subr.bf16.mxu0 0
        %330 = vmatpush1.bf16.msra.mxu0 %v308
        %331 = vmatprep.subr.bf16.mxu0 0
        %332 = vmatpush1.bf16.msra.mxu0 %v307
        %333 = vmatprep.subr.bf16.mxu0 0
        %334 = vmatpush1.bf16.msra.mxu0 %v306
        %335 = vmatprep.subr.bf16.mxu0 0
        %336 = vmatpush1.bf16.msra.mxu0 %v305
        %337 = vmatprep.subr.bf16.mxu0 0
        %338 = vmatpush2.bf16.msra.mxu0 0
        %339 = vmatprep.subr.bf16.mxu0 0
        %340 = vmatpush2.bf16.msra.mxu0 0
        %341 = vmatprep.subr.bf16.mxu0 0
        %342 = vmatpush2.bf16.msra.mxu0 0
        %343 = vmatprep.subr.bf16.mxu0 0
        %344 = vmatpush2.bf16.msra.mxu0 0
        %345 = vmatprep.subr.bf16.mxu0 0
        %346 = vmatpush2.bf16.msra.mxu0 0
        %347 = vmatprep.subr.bf16.mxu0 0
        %348 = vmatpush2.bf16.msra.mxu0 0
        %349 = vmatprep.subr.bf16.mxu0 0
        %350 = vmatpush2.bf16.msra.mxu0 0
        %351 = vmatprep.subr.bf16.mxu0 0
        %352 = vmatpush2.bf16.msra.mxu0 0
        %353 = vmatprep.mubr.bf16.mxu0 0
        %354 = vmatmul.mubr.bf16.gmra.mxu0 %v271
        %v355 = vpop.f32.mrf.mxu0
        %v356 = vadd.f32 %v265, %v355
        %v357 = vpop.f32.mrf.mxu0
        %v358 = vpop.f32.mrf.mxu0
        %v359 = vadd.f32 %v265, %v358
        %v360 = vpop.f32.mrf.mxu0
        %361 = vdwg.mxu0
        %v362 = vmul.f32 %v356, 0.5
        %v363 = vmul.f32 %v359, 0.5
        %v364 = vmul.f32 %v356, 0.70710677
        %v365 = vmul.f32 %v359, 0.70710677
        %v366 = verf.f32.pop %v364
        %v367 = verf.f32.pop %v365
        %v368 = vadd.f32 %v366, 1.0
        %v369 = vadd.f32 %v367, 1.0
        %v370 = vmul.f32 %v362, %v368
        %v371 = vmul.f32 %v363, %v369
        %372 = vst [vmem:[%s235] sm:$0xff] %v370
        %373 = vst [vmem:[%s235 + $0x8] sm:$0xff] %v371
        %s374 = sand.u32 %s121, 1
        %s375 = scalar_lea.sflag [#allocation4], %s374
        %s376 = sand.u32 %s121, 1
        %s377 = smul.addr %s376, 16
        %s378 = scalar_lea.vmem [#allocation7], %s377
        // Predicated region
        $region41: #{tpu_custom_call.1} parent=31 // pred_check
          %p379 = pneg %p131
        $region42: #{tpu_custom_call.1} parent=31 // pred_check_branch
          %381 = sbr.rel (%p379) target = $region44
        $region43: #{tpu_custom_call.1} parent=31 // pred_region
          %s382 = smul.u32 2, %s25
          %s384 = ssub.s32 256, 256
          %385 = vsyncadd %s375, %s384
          %s386 = smul.addr %s382, 2
          %s387 = sadd.s32 %s26, %s386
          %s388 = smul.addr %s387, 128
          %s389 = scalar_lea.hbm %s3, %s388
          %s390 = sshll.u32 %s378, 4
          %s391 = int_to_ptr.vmem [resolvable:$true] %s390
          %396 = dma.vmem_to_hbm [thread:$0]  %s391, 256, %s389, %s375, 128, 256, 8
        $region44: #{tpu_custom_call.1} parent=31 // pred_fallthru
          _
      $region32: #{tpu_custom_call.1} parent=5 // pred_fallthru
        _
      %p397 = scmp.le.s32.totalorder 2, %s16
      // Predicated region
      $region45: #{tpu_custom_call.1} parent=5 // pred_check
        %p398 = pneg %p397
      $region46: #{tpu_custom_call.1} parent=5 // pred_check_branch
        %400 = sbr.rel (%p398) target = $region48
      $region47: #{tpu_custom_call.1} parent=5 // pred_region
        %s401 = ssub.s32 %s16, 2
        // Predicated region
        $region49: #{tpu_custom_call.1} parent=47 // pred_check
          %p402 = pneg %p137
        $region50: #{tpu_custom_call.1} parent=47 // pred_check_branch
          %404 = sbr.rel (%p402) target = $region52
        $region51: #{tpu_custom_call.1} parent=47 // pred_region
          %s405 = sand.u32 %s122, 1
          %s406 = scalar_lea.sflag [#allocation4], %s405
          %s407 = sand.u32 %s122, 1
          %s408 = smul.addr %s407, 16
          %s409 = scalar_lea.vmem [#allocation7], %s408
          %410 = dma.done %s406, 256
        $region52: #{tpu_custom_call.1} parent=47 // pred_fallthru
          _
      $region48: #{tpu_custom_call.1} parent=5 // pred_fallthru
        _
    $region6: #{tpu_custom_call.1} parent=1 // loop_footer
      %s20 = sadd.s32 1, %s16
    $region7: #{tpu_custom_call.1} parent=1 // loop_footer_branch
      %15 = sbr.rel target = $region3
    $region8: #{tpu_custom_call.1} parent=1 // loop_exit
      _
    %411 = vsyncpa [#allocation3], 1
    %s412 = scalar_lea.sflag [#allocation3], 1
    %413 = vsyncpa %s412, 1
    %414 = vsyncpa [#allocation6], 1
    %s415 = scalar_lea.sflag [#allocation6], 1
    %416 = vsyncpa %s415, 1
    %417 = vsyncpa [#allocation4], 1
    %s418 = scalar_lea.sflag [#allocation4], 1
    %419 = vsyncpa %s418, 1

</llo_original>
